<compile_context>
chip_gen: v7x
topology: tpu7x:2x2x1
jax: 0.10.0
libtpu: 0.0.40
codegen_flags: <defaults>
</compile_context>

<pallas_src>
from typing import NamedTuple

import jax
import jax.numpy as jnp
from jax.experimental import pallas as pl
from jax.experimental.pallas import tpu as pltpu


def _round_up(x, m):
    return ((x + m - 1) // m) * m


def _cdiv(a, b):
    return (a + b - 1) // b


class ContNetMeta(NamedTuple):
    lane: int          # lane width (multiple of 128)
    nf: int            # num_features
    nf_pad: int        # num_features rounded up to a sublane multiple (8)
    nc: int            # num_containers
    nct: int           # num_contents
    n_container: int   # layers in the container branch
    n_content: int     # layers in the content branch
    n_blocks: int      # weight blocks in the slab (content_input is split in 2)
    n_bias_rows: int   # rows in the bias slab


# --------------------------------------------------------------------------
# Parameter init (mimics nn.Linear uniform +-1/sqrt(fan_in); weights stored
# as (in, out) so each layer is y = x @ W + b).
# --------------------------------------------------------------------------
def init_contnet_params(key, num_features, num_containers, num_contents,
                        container_hidden_layers, contents_hidden_layers):
    def linear(k, fan_in, fan_out):
        kw, kb = jax.random.split(k)
        bound = 1.0 / jnp.sqrt(jnp.float32(fan_in))
        w = jax.random.uniform(kw, (fan_in, fan_out), jnp.float32, -bound, bound)
        b = jax.random.uniform(kb, (fan_out,), jnp.float32, -bound, bound)
        return w, b

    container_dims = [num_features] + list(container_hidden_layers) + [num_containers]
    content_dims = ([num_features + num_containers] + list(contents_hidden_layers)
                    + [num_contents])
    keys = jax.random.split(key, (len(container_dims) - 1) + (len(content_dims) - 1))
    k = 0
    container_layers = []
    for i in range(len(container_dims) - 1):
        container_layers.append(linear(keys[k], container_dims[i], container_dims[i + 1]))
        k += 1
    content_layers = []
    for i in range(len(content_dims) - 1):
        content_layers.append(linear(keys[k], content_dims[i], content_dims[i + 1]))
        k += 1
    return container_layers, content_layers


# --------------------------------------------------------------------------
# One-time packing (NOT in the per-call path):
#   * w_slab: (n_blocks, lane, lane) bf16, one self-contained zero-padded block
#     per layer; the content_input layer is split into (spec rows | probs rows)
#     blocks so the concat(spec, container_probs) becomes two dots.
#   * b_slab: (round_up(n_layers, 8), lane) f32, one bias row per layer.
# --------------------------------------------------------------------------
def pack_contnet_params(container_layers, content_layers,
                        num_features, num_containers, num_contents):
    nf, nc, nct = int(num_features), int(num_containers), int(num_contents)
    n_container = len(container_layers)
    n_content = len(content_layers)
    assert n_container >= 2 and n_content >= 2, "each branch needs input+output layers"

    all_dims = [nc + nct, nf]
    for w, _ in list(container_layers) + list(content_layers):
        all_dims += [int(w.shape[0]), int(w.shape[1])]
    lane = _round_up(max(all_dims), 128)
    nf_pad = _round_up(nf, 8)

    # Explicit guards against silent wraparound / block overflow.
    assert nc + nct <= lane, "packed output lanes must fit in one lane block"
    for w, _ in list(container_layers) + list(content_layers):
        assert int(w.shape[0]) <= lane and int(w.shape[1]) <= lane
    wc, bc = content_layers[0]
    assert int(wc.shape[0]) == nf + nc, "content_input fan_in must be nf + nc"

    def wblock(w2d):
        fi, fo = int(w2d.shape[0]), int(w2d.shape[1])
        return (jnp.zeros((lane, lane), jnp.float32)
                .at[:fi, :fo].set(w2d.astype(jnp.float32)))

    blocks, biases = [], []
    for w, b in container_layers:                 # container branch
        blocks.append(wblock(w)); biases.append(b)
    blocks.append(wblock(wc[:nf]))                # content_input: spec rows
    blocks.append(wblock(wc[nf:nf + nc]))         # content_input: container-prob rows
    biases.append(bc)
    for w, b in content_layers[1:]:               # rest of content branch
        blocks.append(wblock(w)); biases.append(b)

    w_slab = jnp.stack(blocks).astype(jnp.bfloat16)      # (n_blocks, lane, lane)

    n_layers = len(biases)
    n_bias_rows = _round_up(n_layers, 8)
    b_slab = jnp.zeros((n_bias_rows, lane), jnp.float32)
    for i, b in enumerate(biases):
        b_slab = b_slab.at[i, :int(b.shape[0])].set(b.astype(jnp.float32))

    meta = ContNetMeta(lane=lane, nf=nf, nf_pad=nf_pad, nc=nc, nct=nct,
                       n_container=n_container, n_content=n_content,
                       n_blocks=len(blocks), n_bias_rows=n_bias_rows)
    return w_slab, b_slab, meta


# --------------------------------------------------------------------------
# Fused kernel
# --------------------------------------------------------------------------
def _make_contnet_kernel(meta: ContNetMeta):
    nf_pad = meta.nf_pad
    nc = meta.nc
    n_container = meta.n_container
    n_content = meta.n_content

    def kernel(x_ref, w_ref, b_ref, out_ref):
        bf16 = jnp.bfloat16

        def dense(h16, blk, bias_row, krows=None):
            # Self-contained zero-padded weight block -> junk lanes of h beyond
            # the real fan_in hit zero rows and cannot corrupt the result.
            if krows is None:
                w = w_ref[blk]                              # (lane, lane) bf16
            else:
                w = w_ref[blk, pl.ds(0, krows), :]          # (krows, lane) bf16
            y = jnp.dot(h16, w, preferred_element_type=jnp.float32)
            return y + b_ref[pl.ds(bias_row, 1), :]         # f32 bias, post-matmul

        x16 = x_ref[...].astype(bf16)                       # (tb, nf_pad)

        # ---- container branch ----
        h = jnp.maximum(dense(x16, 0, 0, krows=nf_pad), 0.0)
        for li in range(1, n_container):
            y = dense(h.astype(bf16), li, li)
            h = y if li == n_container - 1 else jnp.maximum(y, 0.0)
        container_y = h            # container logits in lanes [0, nc), zeros elsewhere

        # ---- content branch ----
        # torch.cat((spec, container_probs)) realized as two dots against the
        # split content_input weight (spec rows | probs rows).
        blk = n_container
        y = (dense(x16, blk, n_container, krows=nf_pad)
             + jnp.dot(container_y.astype(bf16), w_ref[blk + 1],
                       preferred_element_type=jnp.float32))
        h = jnp.maximum(y, 0.0)
        blk += 2
        for li in range(1, n_content):
            y = dense(h.astype(bf16), blk, n_container + li)
            h = y if li == n_content - 1 else jnp.maximum(y, 0.0)
            blk += 1
        content_y = h              # content logits in lanes [0, nct), zeros elsewhere

        # Single lane-dense output: container logits in [0, nc),
        # content logits in [nc, nc + nct).  Roll is on the XLU (off VALU/MXU).
        out_ref[...] = container_y + pltpu.roll(content_y, shift=nc, axis=1)

    return kernel


# --------------------------------------------------------------------------
# Wrapper
# --------------------------------------------------------------------------
def _choose_batch_tile(batch, cap):
    """Sublane-rounded batch tile; >=2 grid steps for large batches (v7x megacore)."""
    b8 = _round_up(batch, 8)
    if b8 <= 1024:
        return b8                           # single step: per-step overhead dominates
    return min(_round_up(_cdiv(b8, 2), 8), cap)


def make_contnet_forward(meta: ContNetMeta, *, max_batch_block=2048):
    # max_batch_block=2048 keeps tiles comfortably under the 32 MiB scoped VMEM
    # default on v5e/v6e/v7x; it can be raised to 4096-8192 on v5e/v6e (128 MiB
    # physical VMEM) together with vmem_limit_bytes if desired.
    lane, nf, nf_pad = meta.lane, meta.nf, meta.nf_pad
    nc, nct = meta.nc, meta.nct
    n_blocks, n_bias_rows = meta.n_blocks, meta.n_bias_rows
    kernel = _make_contnet_kernel(meta)

    def forward(spec_data, w_slab, b_slab):
        batch = spec_data.shape[0]
        x = spec_data.astype(jnp.float32)
        if nf_pad != nf:                    # tiny sublane pad only (not to 128 lanes)
            x = jnp.pad(x, ((0, 0), (0, nf_pad - nf)))

        tb = _choose_batch_tile(batch, max_batch_block)
        grid = (_cdiv(batch, tb),)

        cost = pl.CostEstimate(
            flops=2 * batch * lane * lane * n_blocks,
            transcendentals=0,
            bytes_accessed=(4 * batch * (nf_pad + lane)
                            + 2 * n_blocks * lane * lane
                            + 4 * n_bias_rows * lane))

        out = pl.pallas_call(
            kernel,
            out_shape=jax.ShapeDtypeStruct((batch, lane), jnp.float32),
            grid=grid,
            in_specs=[
                pl.BlockSpec((tb, nf_pad), lambda i: (i, 0)),
                pl.BlockSpec((n_blocks, lane, lane), lambda i: (0, 0, 0)),   # resident
                pl.BlockSpec((n_bias_rows, lane), lambda i: (0, 0)),         # resident
            ],
            out_specs=pl.BlockSpec((tb, lane), lambda i: (i, 0)),
            compiler_params=pltpu.CompilerParams(
                dimension_semantics=("parallel",)),
            cost_estimate=cost,
        )(x, w_slab, b_slab)

        container_probs = out[:, :nc]
        content_probs = out[:, nc:nc + nct]
        return [container_probs, content_probs]

    return jax.jit(forward)


# --------------------------------------------------------------------------
# Pure-JAX reference (matches the PyTorch forward, eval mode).
# cast_dtype=bfloat16 reproduces the kernel's bf16-operand / f32-accumulate path.
# --------------------------------------------------------------------------
def contnet_forward_ref(spec_data, container_layers, content_layers, *, cast_dtype=None):
    def c(a):
        return a.astype(cast_dtype).astype(jnp.float32) if cast_dtype is not None else a

    x = spec_data.astype(jnp.float32)
    h = x
    for i, (w, b) in enumerate(container_layers):
        h = jnp.dot(c(h), c(w), preferred_element_type=jnp.float32) + b
        if i < len(container_layers) - 1:
            h = jnp.maximum(h, 0.0)
    container_probs = h
    h = jnp.concatenate([x, container_probs], axis=1)
    for i, (w, b) in enumerate(content_layers):
        h = jnp.dot(c(h), c(w), preferred_element_type=jnp.float32) + b
        if i < len(content_layers) - 1:
            h = jnp.maximum(h, 0.0)
    return [container_probs, h]


if __name__ == "__main__":
    batch = 8
    num_features = 32
    num_containers = 16
    num_contents = 16
    container_hidden_layers = [32, 32]
    contents_hidden_layers = [32]

    key = jax.random.PRNGKey(0)
    k_params, k_data = jax.random.split(key)

    container_layers, content_layers = init_contnet_params(
        k_params, num_features, num_containers, num_contents,
        container_hidden_layers, contents_hidden_layers)

    # One-time packing (hoisted out of the per-call path).
    w_slab, b_slab, meta = pack_contnet_params(
        container_layers, content_layers,
        num_features, num_containers, num_contents)

    forward = make_contnet_forward(meta)

    spec_data = jax.random.normal(k_data, (batch, num_features), jnp.float32)

    container_probs, content_probs = forward(spec_data, w_slab, b_slab)
    jax.block_until_ready(container_probs)
    jax.block_until_ready(content_probs)

    assert container_probs.shape == (batch, num_containers)
    assert content_probs.shape == (batch, num_contents)

    # Structural check: reference with bf16-rounded weights/activations (the
    # exact arithmetic the kernel performs) — tight tolerance.
    ref_c_bf, ref_t_bf = contnet_forward_ref(
        spec_data, container_layers, content_layers, cast_dtype=jnp.bfloat16)
    assert jnp.allclose(container_probs, ref_c_bf, atol=2e-3, rtol=2e-3)
    assert jnp.allclose(content_probs, ref_t_bf, atol=2e-3, rtol=2e-3)

    # Precision check vs. the module's f32 semantics — loosened tolerance is the
    # expected cost of the bf16 MXU path (as anticipated in the review).
    ref_c, ref_t = contnet_forward_ref(spec_data, container_layers, content_layers)
    assert jnp.allclose(container_probs, ref_c, atol=5e-2, rtol=5e-2)
    assert jnp.allclose(content_probs, ref_t, atol=5e-2, rtol=5e-2)

    print("KERNEL_OK")
</pallas_src>

<mosaic_0001>
module attributes {stable_mosaic.version = 11 : i64} {
  func.func @kernel(%arg0: i32, %arg1: memref<8x32xf32, #tpu.memory_space<vmem>>, %arg2: memref<6x128x128xbf16, #tpu.memory_space<vmem>>, %arg3: memref<8x128xf32, #tpu.memory_space<vmem>>, %arg4: memref<8x128xf32, #tpu.memory_space<vmem>>) attributes {dimension_semantics = [#tpu.dimension_semantics<parallel>], iteration_bounds = array<i64: 1>, scalar_prefetch = 0 : i64, scratch_operands = 0 : i64, tpu.core_type = #tpu.core_type<tc>, window_params = [{transform_indices = @transform_0, window_bounds = array<i64: 8, 32>}, {pipeline_mode = #tpu.pipeline_mode<synchronous>, transform_indices = @transform_1, window_bounds = array<i64: 6, 128, 128>}, {pipeline_mode = #tpu.pipeline_mode<synchronous>, transform_indices = @transform_2, window_bounds = array<i64: 8, 128>}, {transform_indices = @transform_3, window_bounds = array<i64: 8, 128>}]} {
    %c0 = arith.constant 0 : index
    %c0_0 = arith.constant 0 : index
    %0 = vector.load %arg1[%c0, %c0_0] : memref<8x32xf32, #tpu.memory_space<vmem>>, vector<8x32xf32>
    %1 = arith.truncf %0 : vector<8x32xf32> to vector<8x32xbf16>
    %c0_1 = arith.constant 0 : index
    %c0_2 = arith.constant 0 : index
    %c0_3 = arith.constant 0 : index
    %2 = vector.load %arg2[%c0_1, %c0_2, %c0_3] : memref<6x128x128xbf16, #tpu.memory_space<vmem>>, vector<1x32x128xbf16>
    %3 = vector.shape_cast %2 : vector<1x32x128xbf16> to vector<32x128xbf16>
    %cst = arith.constant dense<0.000000e+00> : vector<8x128xf32>
    %4 = tpu.matmul %1, %3, %cst {dimension_numbers = #tpu.dot_dimension_numbers<[1], [0], [0], [1], [0, 0, 1, 1], [], []>} : vector<8x32xbf16>, vector<32x128xbf16>, vector<8x128xf32> -> vector<8x128xf32>
    %c0_4 = arith.constant 0 : index
    %c0_5 = arith.constant 0 : index
    %5 = vector.load %arg3[%c0_4, %c0_5] : memref<8x128xf32, #tpu.memory_space<vmem>>, vector<1x128xf32>
    %6 = vector.broadcast %5 : vector<1x128xf32> to vector<8x128xf32>
    %7 = arith.addf %4, %6 : vector<8x128xf32>
    %cst_6 = arith.constant 0.000000e+00 : f32
    %8 = vector.broadcast %cst_6 : f32 to vector<8x128xf32>
    %9 = arith.maximumf %7, %8 : vector<8x128xf32>
    %10 = arith.truncf %9 : vector<8x128xf32> to vector<8x128xbf16>
    %c1 = arith.constant 1 : index
    %c0_7 = arith.constant 0 : index
    %c0_8 = arith.constant 0 : index
    %11 = vector.load %arg2[%c1, %c0_7, %c0_8] : memref<6x128x128xbf16, #tpu.memory_space<vmem>>, vector<1x128x128xbf16>
    %12 = vector.shape_cast %11 : vector<1x128x128xbf16> to vector<128x128xbf16>
    %cst_9 = arith.constant dense<0.000000e+00> : vector<8x128xf32>
    %13 = tpu.matmul %10, %12, %cst_9 {dimension_numbers = #tpu.dot_dimension_numbers<[1], [0], [0], [1], [0, 0, 1, 1], [], []>} : vector<8x128xbf16>, vector<128x128xbf16>, vector<8x128xf32> -> vector<8x128xf32>
    %c1_10 = arith.constant 1 : index
    %c0_11 = arith.constant 0 : index
    %14 = vector.load %arg3[%c1_10, %c0_11] : memref<8x128xf32, #tpu.memory_space<vmem>>, vector<1x128xf32>
    %15 = vector.broadcast %14 : vector<1x128xf32> to vector<8x128xf32>
    %16 = arith.addf %13, %15 : vector<8x128xf32>
    %cst_12 = arith.constant 0.000000e+00 : f32
    %17 = vector.broadcast %cst_12 : f32 to vector<8x128xf32>
    %18 = arith.maximumf %16, %17 : vector<8x128xf32>
    %19 = arith.truncf %18 : vector<8x128xf32> to vector<8x128xbf16>
    %c2 = arith.constant 2 : index
    %c0_13 = arith.constant 0 : index
    %c0_14 = arith.constant 0 : index
    %20 = vector.load %arg2[%c2, %c0_13, %c0_14] : memref<6x128x128xbf16, #tpu.memory_space<vmem>>, vector<1x128x128xbf16>
    %21 = vector.shape_cast %20 : vector<1x128x128xbf16> to vector<128x128xbf16>
    %cst_15 = arith.constant dense<0.000000e+00> : vector<8x128xf32>
    %22 = tpu.matmul %19, %21, %cst_15 {dimension_numbers = #tpu.dot_dimension_numbers<[1], [0], [0], [1], [0, 0, 1, 1], [], []>} : vector<8x128xbf16>, vector<128x128xbf16>, vector<8x128xf32> -> vector<8x128xf32>
    %c2_16 = arith.constant 2 : index
    %c0_17 = arith.constant 0 : index
    %23 = vector.load %arg3[%c2_16, %c0_17] : memref<8x128xf32, #tpu.memory_space<vmem>>, vector<1x128xf32>
    %24 = vector.broadcast %23 : vector<1x128xf32> to vector<8x128xf32>
    %25 = arith.addf %22, %24 : vector<8x128xf32>
    %c3 = arith.constant 3 : index
    %c0_18 = arith.constant 0 : index
    %c0_19 = arith.constant 0 : index
    %26 = vector.load %arg2[%c3, %c0_18, %c0_19] : memref<6x128x128xbf16, #tpu.memory_space<vmem>>, vector<1x32x128xbf16>
    %27 = vector.shape_cast %26 : vector<1x32x128xbf16> to vector<32x128xbf16>
    %cst_20 = arith.constant dense<0.000000e+00> : vector<8x128xf32>
    %28 = tpu.matmul %1, %27, %cst_20 {dimension_numbers = #tpu.dot_dimension_numbers<[1], [0], [0], [1], [0, 0, 1, 1], [], []>} : vector<8x32xbf16>, vector<32x128xbf16>, vector<8x128xf32> -> vector<8x128xf32>
    %c3_21 = arith.constant 3 : index
    %c0_22 = arith.constant 0 : index
    %29 = vector.load %arg3[%c3_21, %c0_22] : memref<8x128xf32, #tpu.memory_space<vmem>>, vector<1x128xf32>
    %30 = vector.broadcast %29 : vector<1x128xf32> to vector<8x128xf32>
    %31 = arith.addf %28, %30 : vector<8x128xf32>
    %32 = arith.truncf %25 : vector<8x128xf32> to vector<8x128xbf16>
    %c4 = arith.constant 4 : index
    %c0_23 = arith.constant 0 : index
    %c0_24 = arith.constant 0 : index
    %33 = vector.load %arg2[%c4, %c0_23, %c0_24] : memref<6x128x128xbf16, #tpu.memory_space<vmem>>, vector<1x128x128xbf16>
    %34 = vector.shape_cast %33 : vector<1x128x128xbf16> to vector<128x128xbf16>
    %cst_25 = arith.constant dense<0.000000e+00> : vector<8x128xf32>
    %35 = tpu.matmul %32, %34, %cst_25 {dimension_numbers = #tpu.dot_dimension_numbers<[1], [0], [0], [1], [0, 0, 1, 1], [], []>} : vector<8x128xbf16>, vector<128x128xbf16>, vector<8x128xf32> -> vector<8x128xf32>
    %36 = arith.addf %31, %35 : vector<8x128xf32>
    %cst_26 = arith.constant 0.000000e+00 : f32
    %37 = vector.broadcast %cst_26 : f32 to vector<8x128xf32>
    %38 = arith.maximumf %36, %37 : vector<8x128xf32>
    %39 = arith.truncf %38 : vector<8x128xf32> to vector<8x128xbf16>
    %c5 = arith.constant 5 : index
    %c0_27 = arith.constant 0 : index
    %c0_28 = arith.constant 0 : index
    %40 = vector.load %arg2[%c5, %c0_27, %c0_28] : memref<6x128x128xbf16, #tpu.memory_space<vmem>>, vector<1x128x128xbf16>
    %41 = vector.shape_cast %40 : vector<1x128x128xbf16> to vector<128x128xbf16>
    %cst_29 = arith.constant dense<0.000000e+00> : vector<8x128xf32>
    %42 = tpu.matmul %39, %41, %cst_29 {dimension_numbers = #tpu.dot_dimension_numbers<[1], [0], [0], [1], [0, 0, 1, 1], [], []>} : vector<8x128xbf16>, vector<128x128xbf16>, vector<8x128xf32> -> vector<8x128xf32>
    %c4_30 = arith.constant 4 : index
    %c0_31 = arith.constant 0 : index
    %43 = vector.load %arg3[%c4_30, %c0_31] : memref<8x128xf32, #tpu.memory_space<vmem>>, vector<1x128xf32>
    %44 = vector.broadcast %43 : vector<1x128xf32> to vector<8x128xf32>
    %45 = arith.addf %42, %44 : vector<8x128xf32>
    %c16_i32 = arith.constant 16 : i32
    %46 = tpu.dynamic_rotate %45 by %c16_i32 dim 1 : vector<8x128xf32>, i32 -> vector<8x128xf32>
    %47 = arith.addf %25, %46 : vector<8x128xf32>
    %c0_32 = arith.constant 0 : index
    %c0_33 = arith.constant 0 : index
    %48 = vector.load %arg4[%c0_32, %c0_33] : memref<8x128xf32, #tpu.memory_space<vmem>>, vector<8x128xf32>
    tpu.vector_store %arg4[%c0_32, %c0_33], %47 {strides = array<i32>} : memref<8x128xf32, #tpu.memory_space<vmem>>, vector<8x128xf32>,
    return
  }
  func.func @transform_0(%arg0: i32) -> (i32, i32) {
    %c0_i32 = arith.constant 0 : i32
    %c0_i32_0 = arith.constant 0 : i32
    return %arg0, %c0_i32 : i32, i32
  }
  func.func @transform_1(%arg0: i32) -> (i32, i32, i32) {
    %c0_i32 = arith.constant 0 : i32
    %c0_i32_0 = arith.constant 0 : i32
    %c0_i32_1 = arith.constant 0 : i32
    %c0_i32_2 = arith.constant 0 : i32
    return %c0_i32, %c0_i32_0, %c0_i32_1 : i32, i32, i32
  }
  func.func @transform_2(%arg0: i32) -> (i32, i32) {
    %c0_i32 = arith.constant 0 : i32
    %c0_i32_0 = arith.constant 0 : i32
    %c0_i32_1 = arith.constant 0 : i32
    return %c0_i32, %c0_i32_0 : i32, i32
  }
  func.func @transform_3(%arg0: i32) -> (i32, i32) {
    %c0_i32 = arith.constant 0 : i32
    %c0_i32_0 = arith.constant 0 : i32
    return %arg0, %c0_i32 : i32, i32
  }
}

</mosaic_0001>

<llo_original>
// kernel: forward.1
$region0: #{forward.1}
  #allocation0 [shape = 'u32[]', space=smem, size = 0x4, offset = 0x4, fixed_abs, tag = 'smem constant byte address 0x4 - core index']
  #allocation1 [shape = 'u32[144,128]{1,0:T(1,128)}', space=vmem, size = 0x12000, scoped, tag = 'internal scratch']
  %s0 = inlined_call_operand.hbm [shape: f32[8,32], index: 0, kind: input, shape index: {}]
  %s1 = inlined_call_operand.hbm [shape: bf16[6,128,128], index: 1, kind: input, shape index: {}]
  %s2 = inlined_call_operand.hbm [shape: f32[8,128], index: 2, kind: input, shape index: {}]
  %s3 = inlined_call_operand.vmem [shape: f32[8,128], index: 3, kind: output, shape index: {}]
  %s4 = sld [smem:[#allocation0]]
  $region34: #{forward.1} parent=0
    _
  %s6 = ssub.s32 1, %s4
  %s7 = scalar_select 0, %s6, %s4
  $region1: #{forward.1} parent=0
    #allocation2 [shape = 'u8[4096]{0}', space=vmem, size = 0x1000, scoped, tag = 'input window, operand 0, single buffered']
    #allocation3 [shape = 's32[1]{0}', space=sflag, size = 0x4, scoped, tag = 'scoped memory for forward.1']
    #allocation4 [shape = 'u8[196608]{0}', space=vmem, size = 0x30000, scoped, tag = 'input window, operand 1, single buffered']
    #allocation5 [shape = 's32[1]{0}', space=sflag, size = 0x4, scoped, tag = 'scoped memory for forward.1']
    #allocation6 [shape = 'u8[4096]{0}', space=vmem, size = 0x1000, scoped, tag = 'input window, operand 2, single buffered']
    %8 = vsyncpa [#allocation3], 0
    %9 = vsyncpa [#allocation5], 0
    // Predicated region
    $region2: #{forward.1} parent=1 // pred_check
      _
    $region3: #{forward.1} parent=1 // pred_check_branch
      %11 = sbr.rel (0) target = $region5
    $region4: #{forward.1} parent=1 // pred_region
      %s13 = ssub.s32 128, 128
      %14 = vsyncadd [#allocation3], %s13
      %s16 = sshll.u32 [#allocation2], 4
      %s17 = int_to_ptr.vmem [resolvable:$true] %s16
      %19 = dma.hbm_to_vmem [thread:$0]  %s0, 128, %s17, [#allocation3]
    $region5: #{forward.1} parent=1 // pred_fallthru
      _
    // Predicated region
    $region6: #{forward.1} parent=1 // pred_check
      _
    $region7: #{forward.1} parent=1 // pred_check_branch
      %21 = sbr.rel (0) target = $region9
    $region8: #{forward.1} parent=1 // pred_region
      %s23 = ssub.s32 6144, 6144
      %24 = vsyncadd [#allocation5], %s23
      %s25 = sshll.u32 [#allocation4], 4
      %s26 = int_to_ptr.vmem [resolvable:$true] %s25
      %31 = dma.hbm_to_vmem [thread:$0]  %s1, 6144, %s26, [#allocation5], 64, 64, 4
    $region9: #{forward.1} parent=1 // pred_fallthru
      _
    // Predicated region
    $region10: #{forward.1} parent=1 // pred_check
      _
    $region11: #{forward.1} parent=1 // pred_check_branch
      %33 = sbr.rel (0) target = $region13
    $region12: #{forward.1} parent=1 // pred_region
      %s35 = ssub.s32 128, 128
      %36 = vsyncadd [#allocation5], %s35
      %s38 = sshll.u32 [#allocation6], 4
      %s39 = int_to_ptr.vmem [resolvable:$true] %s38
      %41 = dma.hbm_to_vmem [thread:$0]  %s2, 128, %s39, [#allocation5]
    $region13: #{forward.1} parent=1 // pred_fallthru
      _
    // Predicated region
    $region14: #{forward.1} parent=1 // pred_check
      _
    $region15: #{forward.1} parent=1 // pred_check_branch
      %43 = sbr.rel (0) target = $region17
    $region16: #{forward.1} parent=1 // pred_region
      %44 = dma.done [#allocation3], 128
    $region17: #{forward.1} parent=1 // pred_fallthru
      _
    // Predicated region
    $region18: #{forward.1} parent=1 // pred_check
      _
    $region19: #{forward.1} parent=1 // pred_check_branch
      %46 = sbr.rel (0) target = $region21
    $region20: #{forward.1} parent=1 // pred_region
      %47 = dma.done [#allocation5], 6144
    $region21: #{forward.1} parent=1 // pred_fallthru
      _
    // Predicated region
    $region22: #{forward.1} parent=1 // pred_check
      _
    $region23: #{forward.1} parent=1 // pred_check_branch
      %49 = sbr.rel (0) target = $region25
    $region24: #{forward.1} parent=1 // pred_region
      %50 = dma.done [#allocation5], 128
    $region25: #{forward.1} parent=1 // pred_fallthru
      _
    %v52 = vld [vmem:[#allocation2] sm:$0xff]
    %v53 = vpack.c.bf16 %v52, %v52
    %v54 = vld [vmem:[#allocation4] sm:$0xf]
    %v55 = vld [vmem:[#allocation4 + $0x4] sm:$0xf]
    %v56 = vld [vmem:[#allocation4 + $0x8] sm:$0xf]
    %v57 = vld [vmem:[#allocation4 + $0xc] sm:$0xf]
    %v58 = vld [vmem:[#allocation6] sm:$0x1]
    %v59 = vlaneseq
    %v60 = vshrl.u32 %v59, 7
    %v61 = vsub.s32 0, %v60
    %v62 = vrot.slane %v58, %v61
    %v67 = vunpack.c.l.b16 %v54
    %v68 = vunpack.c.l.b16 %v55
    %v69 = vunpack.c.l.b16 %v56
    %v70 = vunpack.c.l.b16 %v57
    %v71 = vpack.c.b16 %v68, %v67
    %v72 = vpack.c.b16 %v70, %v69
    %vm75 = vcmask 261120
    %v77 = vsel %vm75, %v53, 0
    %79 = vmatprep.subr.bf16.mxu0 0
    %80 = vmatpush1.bf16.msra.mxu0 %v71
    %81 = vmatprep.subr.bf16.mxu0 0
    %82 = vmatpush1.bf16.msra.mxu0 %v72
    %83 = vmatprep.subr.bf16.mxu0 0
    %84 = vmatpush1.bf16.msra.mxu0 0
    %85 = vmatprep.subr.bf16.mxu0 0
    %86 = vmatpush1.bf16.msra.mxu0 0
    %87 = vmatprep.subr.bf16.mxu0 0
    %88 = vmatpush1.bf16.msra.mxu0 0
    %89 = vmatprep.subr.bf16.mxu0 0
    %90 = vmatpush1.bf16.msra.mxu0 0
    %91 = vmatprep.subr.bf16.mxu0 0
    %92 = vmatpush1.bf16.msra.mxu0 0
    %93 = vmatprep.subr.bf16.mxu0 0
    %94 = vmatpush1.bf16.msra.mxu0 0
    %95 = vmatprep.subr.bf16.mxu0 0
    %96 = vmatpush1.bf16.msra.mxu0 0
    %97 = vmatprep.subr.bf16.mxu0 0
    %98 = vmatpush1.bf16.msra.mxu0 0
    %99 = vmatprep.subr.bf16.mxu0 0
    %100 = vmatpush1.bf16.msra.mxu0 0
    %101 = vmatprep.subr.bf16.mxu0 0
    %102 = vmatpush1.bf16.msra.mxu0 0
    %103 = vmatprep.subr.bf16.mxu0 0
    %104 = vmatpush1.bf16.msra.mxu0 0
    %105 = vmatprep.subr.bf16.mxu0 0
    %106 = vmatpush1.bf16.msra.mxu0 0
    %107 = vmatprep.subr.bf16.mxu0 0
    %108 = vmatpush1.bf16.msra.mxu0 0
    %109 = vmatprep.subr.bf16.mxu0 0
    %110 = vmatpush1.bf16.msra.mxu0 0
    %111 = vmatprep.mubr.bf16.mxu0 0
    %112 = vmatmul.mubr.bf16.gmra.mrb[0].mxu0 %v77
    %v113 = vpop.f32.mrb[0].mxu0
    %v114 = vadd.f32 %v62, %v113
    %v115 = vpop.f32.mrb[0].mxu0
    %v116 = vpop.f32.mrb[0].mxu0
    %v117 = vpop.f32.mrb[0].mxu0
    %118 = vdwg.mxu0
    %v119 = vmax.f32 %v114, 0.0
    %v120 = vpack.c.bf16 %v119, %v119
    %s121 = scalar_lea.vmem [#allocation4], 64
    %v122 = vld [vmem:[%s121] sm:$0xf]
    %v123 = vld [vmem:[%s121 + $0x4] sm:$0xf]
    %v124 = vld [vmem:[%s121 + $0x8] sm:$0xf]
    %v125 = vld [vmem:[%s121 + $0xc] sm:$0xf]
    %v126 = vld [vmem:[%s121 + $0x10] sm:$0xf]
    %v127 = vld [vmem:[%s121 + $0x14] sm:$0xf]
    %v128 = vld [vmem:[%s121 + $0x18] sm:$0xf]
    %v129 = vld [vmem:[%s121 + $0x1c] sm:$0xf]
    %v130 = vld [vmem:[%s121 + $0x20] sm:$0xf]
    %v131 = vld [vmem:[%s121 + $0x24] sm:$0xf]
    %v132 = vld [vmem:[%s121 + $0x28] sm:$0xf]
    %v133 = vld [vmem:[%s121 + $0x2c] sm:$0xf]
    %v134 = vld [vmem:[%s121 + $0x30] sm:$0xf]
    %v135 = vld [vmem:[%s121 + $0x34] sm:$0xf]
    %v136 = vld [vmem:[%s121 + $0x38] sm:$0xf]
    %v137 = vld [vmem:[%s121 + $0x3c] sm:$0xf]
    %v138 = vld [vmem:[#allocation6 + $0x1] sm:$0x1]
    %v139 = vlaneseq
    %v140 = vshrl.u32 %v139, 7
    %v141 = vsub.s32 0, %v140
    %v142 = vrot.slane %v138, %v141
    %v159 = vunpack.c.l.b16 %v122
    %v160 = vunpack.c.l.b16 %v123
    %v161 = vunpack.c.l.b16 %v124
    %v162 = vunpack.c.l.b16 %v125
    %v163 = vunpack.c.l.b16 %v126
    %v164 = vunpack.c.l.b16 %v127
    %v165 = vunpack.c.l.b16 %v128
    %v166 = vunpack.c.l.b16 %v129
    %v167 = vunpack.c.l.b16 %v130
    %v168 = vunpack.c.l.b16 %v131
    %v169 = vunpack.c.l.b16 %v132
    %v170 = vunpack.c.l.b16 %v133
    %v171 = vunpack.c.l.b16 %v134
    %v172 = vunpack.c.l.b16 %v135
    %v173 = vunpack.c.l.b16 %v136
    %v174 = vunpack.c.l.b16 %v137
    %v175 = vpack.c.b16 %v160, %v159
    %v176 = vpack.c.b16 %v162, %v161
    %v177 = vpack.c.b16 %v164, %v163
    %v178 = vpack.c.b16 %v166, %v165
    %v179 = vpack.c.b16 %v168, %v167
    %v180 = vpack.c.b16 %v170, %v169
    %v181 = vpack.c.b16 %v172, %v171
    %v182 = vpack.c.b16 %v174, %v173
    %191 = vmatprep.subr.bf16.mxu0 0
    %192 = vmatpush1.bf16.msra.mxu0 %v175
    %193 = vmatprep.subr.bf16.mxu0 0
    %194 = vmatpush1.bf16.msra.mxu0 %v176
    %195 = vmatprep.subr.bf16.mxu0 0
    %196 = vmatpush1.bf16.msra.mxu0 %v177
    %197 = vmatprep.subr.bf16.mxu0 0
    %198 = vmatpush1.bf16.msra.mxu0 %v178
    %199 = vmatprep.subr.bf16.mxu0 0
    %200 = vmatpush1.bf16.msra.mxu0 %v179
    %201 = vmatprep.subr.bf16.mxu0 0
    %202 = vmatpush1.bf16.msra.mxu0 %v180
    %203 = vmatprep.subr.bf16.mxu0 0
    %204 = vmatpush1.bf16.msra.mxu0 %v181
    %205 = vmatprep.subr.bf16.mxu0 0
    %206 = vmatpush1.bf16.msra.mxu0 %v182
    %207 = vmatprep.subr.bf16.mxu0 0
    %208 = vmatpush1.bf16.msra.mxu0 0
    %209 = vmatprep.subr.bf16.mxu0 0
    %210 = vmatpush1.bf16.msra.mxu0 0
    %211 = vmatprep.subr.bf16.mxu0 0
    %212 = vmatpush1.bf16.msra.mxu0 0
    %213 = vmatprep.subr.bf16.mxu0 0
    %214 = vmatpush1.bf16.msra.mxu0 0
    %215 = vmatprep.subr.bf16.mxu0 0
    %216 = vmatpush1.bf16.msra.mxu0 0
    %217 = vmatprep.subr.bf16.mxu0 0
    %218 = vmatpush1.bf16.msra.mxu0 0
    %219 = vmatprep.subr.bf16.mxu0 0
    %220 = vmatpush1.bf16.msra.mxu0 0
    %221 = vmatprep.subr.bf16.mxu0 0
    %222 = vmatpush1.bf16.msra.mxu0 0
    %223 = vmatprep.mubr.bf16.mxu0 0
    %224 = vmatmul.mubr.bf16.gmra.mrb[0].mxu0 %v120
    %v225 = vpop.f32.mrb[0].mxu0
    %v226 = vadd.f32 %v142, %v225
    %v227 = vpop.f32.mrb[0].mxu0
    %v228 = vpop.f32.mrb[0].mxu0
    %v229 = vpop.f32.mrb[0].mxu0
    %230 = vdwg.mxu0
    %v231 = vmax.f32 %v226, 0.0
    %v232 = vpack.c.bf16 %v231, %v231
    %s233 = scalar_lea.vmem [#allocation4], 128
    %v234 = vld [vmem:[%s233] sm:$0xf]
    %v235 = vld [vmem:[%s233 + $0x4] sm:$0xf]
    %v236 = vld [vmem:[%s233 + $0x8] sm:$0xf]
    %v237 = vld [vmem:[%s233 + $0xc] sm:$0xf]
    %v238 = vld [vmem:[%s233 + $0x10] sm:$0xf]
    %v239 = vld [vmem:[%s233 + $0x14] sm:$0xf]
    %v240 = vld [vmem:[%s233 + $0x18] sm:$0xf]
    %v241 = vld [vmem:[%s233 + $0x1c] sm:$0xf]
    %v242 = vld [vmem:[%s233 + $0x20] sm:$0xf]
    %v243 = vld [vmem:[%s233 + $0x24] sm:$0xf]
    %v244 = vld [vmem:[%s233 + $0x28] sm:$0xf]
    %v245 = vld [vmem:[%s233 + $0x2c] sm:$0xf]
    %v246 = vld [vmem:[%s233 + $0x30] sm:$0xf]
    %v247 = vld [vmem:[%s233 + $0x34] sm:$0xf]
    %v248 = vld [vmem:[%s233 + $0x38] sm:$0xf]
    %v249 = vld [vmem:[%s233 + $0x3c] sm:$0xf]
    %v250 = vld [vmem:[#allocation6 + $0x2] sm:$0x1]
    %v251 = vlaneseq
    %v252 = vshrl.u32 %v251, 7
    %v253 = vsub.s32 0, %v252
    %v254 = vrot.slane %v250, %v253
    %v271 = vunpack.c.l.b16 %v234
    %v272 = vunpack.c.l.b16 %v235
    %v273 = vunpack.c.l.b16 %v236
    %v274 = vunpack.c.l.b16 %v237
    %v275 = vunpack.c.l.b16 %v238
    %v276 = vunpack.c.l.b16 %v239
    %v277 = vunpack.c.l.b16 %v240
    %v278 = vunpack.c.l.b16 %v241
    %v279 = vunpack.c.l.b16 %v242
    %v280 = vunpack.c.l.b16 %v243
    %v281 = vunpack.c.l.b16 %v244
    %v282 = vunpack.c.l.b16 %v245
    %v283 = vunpack.c.l.b16 %v246
    %v284 = vunpack.c.l.b16 %v247
    %v285 = vunpack.c.l.b16 %v248
    %v286 = vunpack.c.l.b16 %v249
    %v287 = vpack.c.b16 %v272, %v271
    %v288 = vpack.c.b16 %v274, %v273
    %v289 = vpack.c.b16 %v276, %v275
    %v290 = vpack.c.b16 %v278, %v277
    %v291 = vpack.c.b16 %v280, %v279
    %v292 = vpack.c.b16 %v282, %v281
    %v293 = vpack.c.b16 %v284, %v283
    %v294 = vpack.c.b16 %v286, %v285
    %303 = vmatprep.subr.bf16.mxu0 0
    %304 = vmatpush1.bf16.msra.mxu0 %v287
    %305 = vmatprep.subr.bf16.mxu0 0
    %306 = vmatpush1.bf16.msra.mxu0 %v288
    %307 = vmatprep.subr.bf16.mxu0 0
    %308 = vmatpush1.bf16.msra.mxu0 %v289
    %309 = vmatprep.subr.bf16.mxu0 0
    %310 = vmatpush1.bf16.msra.mxu0 %v290
    %311 = vmatprep.subr.bf16.mxu0 0
    %312 = vmatpush1.bf16.msra.mxu0 %v291
    %313 = vmatprep.subr.bf16.mxu0 0
    %314 = vmatpush1.bf16.msra.mxu0 %v292
    %315 = vmatprep.subr.bf16.mxu0 0
    %316 = vmatpush1.bf16.msra.mxu0 %v293
    %317 = vmatprep.subr.bf16.mxu0 0
    %318 = vmatpush1.bf16.msra.mxu0 %v294
    %319 = vmatprep.subr.bf16.mxu0 0
    %320 = vmatpush1.bf16.msra.mxu0 0
    %321 = vmatprep.subr.bf16.mxu0 0
    %322 = vmatpush1.bf16.msra.mxu0 0
    %323 = vmatprep.subr.bf16.mxu0 0
    %324 = vmatpush1.bf16.msra.mxu0 0
    %325 = vmatprep.subr.bf16.mxu0 0
    %326 = vmatpush1.bf16.msra.mxu0 0
    %327 = vmatprep.subr.bf16.mxu0 0
    %328 = vmatpush1.bf16.msra.mxu0 0
    %329 = vmatprep.subr.bf16.mxu0 0
    %330 = vmatpush1.bf16.msra.mxu0 0
    %331 = vmatprep.subr.bf16.mxu0 0
    %332 = vmatpush1.bf16.msra.mxu0 0
    %333 = vmatprep.subr.bf16.mxu0 0
    %334 = vmatpush1.bf16.msra.mxu0 0
    %335 = vmatprep.mubr.bf16.mxu0 0
    %336 = vmatmul.mubr.bf16.gmra.mrb[0].mxu0 %v232
    %v337 = vpop.f32.mrb[0].mxu0
    %v338 = vadd.f32 %v254, %v337
    %v339 = vpop.f32.mrb[0].mxu0
    %v340 = vpop.f32.mrb[0].mxu0
    %v341 = vpop.f32.mrb[0].mxu0
    %342 = vdwg.mxu0
    %s343 = scalar_lea.vmem [#allocation4], 192
    %v344 = vld [vmem:[%s343] sm:$0xf]
    %v345 = vld [vmem:[%s343 + $0x4] sm:$0xf]
    %v346 = vld [vmem:[%s343 + $0x8] sm:$0xf]
    %v347 = vld [vmem:[%s343 + $0xc] sm:$0xf]
    %v348 = vld [vmem:[#allocation6 + $0x3] sm:$0x1]
    %v349 = vlaneseq
    %v350 = vshrl.u32 %v349, 7
    %v351 = vsub.s32 0, %v350
    %v352 = vrot.slane %v348, %v351
    %v357 = vunpack.c.l.b16 %v344
    %v358 = vunpack.c.l.b16 %v345
    %v359 = vunpack.c.l.b16 %v346
    %v360 = vunpack.c.l.b16 %v347
    %v361 = vpack.c.b16 %v358, %v357
    %v362 = vpack.c.b16 %v360, %v359
    %365 = vmatprep.subr.bf16.mxu0 0
    %366 = vmatpush1.bf16.msra.mxu0 %v361
    %367 = vmatprep.subr.bf16.mxu0 0
    %368 = vmatpush1.bf16.msra.mxu0 %v362
    %369 = vmatprep.subr.bf16.mxu0 0
    %370 = vmatpush1.bf16.msra.mxu0 0
    %371 = vmatprep.subr.bf16.mxu0 0
    %372 = vmatpush1.bf16.msra.mxu0 0
    %373 = vmatprep.subr.bf16.mxu0 0
    %374 = vmatpush1.bf16.msra.mxu0 0
    %375 = vmatprep.subr.bf16.mxu0 0
    %376 = vmatpush1.bf16.msra.mxu0 0
    %377 = vmatprep.subr.bf16.mxu0 0
    %378 = vmatpush1.bf16.msra.mxu0 0
    %379 = vmatprep.subr.bf16.mxu0 0
    %380 = vmatpush1.bf16.msra.mxu0 0
    %381 = vmatprep.subr.bf16.mxu0 0
    %382 = vmatpush1.bf16.msra.mxu0 0
    %383 = vmatprep.subr.bf16.mxu0 0
    %384 = vmatpush1.bf16.msra.mxu0 0
    %385 = vmatprep.subr.bf16.mxu0 0
    %386 = vmatpush1.bf16.msra.mxu0 0
    %387 = vmatprep.subr.bf16.mxu0 0
    %388 = vmatpush1.bf16.msra.mxu0 0
    %389 = vmatprep.subr.bf16.mxu0 0
    %390 = vmatpush1.bf16.msra.mxu0 0
    %391 = vmatprep.subr.bf16.mxu0 0
    %392 = vmatpush1.bf16.msra.mxu0 0
    %393 = vmatprep.subr.bf16.mxu0 0
    %394 = vmatpush1.bf16.msra.mxu0 0
    %395 = vmatprep.subr.bf16.mxu0 0
    %396 = vmatpush1.bf16.msra.mxu0 0
    %397 = vmatprep.mubr.bf16.mxu0 0
    %398 = vmatmul.mubr.bf16.gmra.mrb[0].mxu0 %v77
    %v399 = vpop.f32.mrb[0].mxu0
    %v400 = vadd.f32 %v352, %v399
    %v401 = vpop.f32.mrb[0].mxu0
    %v402 = vpop.f32.mrb[0].mxu0
    %v403 = vpop.f32.mrb[0].mxu0
    %404 = vdwg.mxu0
    %v405 = vpack.c.bf16 %v338, %v338
    %s406 = scalar_lea.vmem [#allocation4], 256
    %v407 = vld [vmem:[%s406] sm:$0xf]
    %v408 = vld [vmem:[%s406 + $0x4] sm:$0xf]
    %v409 = vld [vmem:[%s406 + $0x8] sm:$0xf]
    %v410 = vld [vmem:[%s406 + $0xc] sm:$0xf]
    %v411 = vld [vmem:[%s406 + $0x10] sm:$0xf]
    %v412 = vld [vmem:[%s406 + $0x14] sm:$0xf]
    %v413 = vld [vmem:[%s406 + $0x18] sm:$0xf]
    %v414 = vld [vmem:[%s406 + $0x1c] sm:$0xf]
    %v415 = vld [vmem:[%s406 + $0x20] sm:$0xf]
    %v416 = vld [vmem:[%s406 + $0x24] sm:$0xf]
    %v417 = vld [vmem:[%s406 + $0x28] sm:$0xf]
    %v418 = vld [vmem:[%s406 + $0x2c] sm:$0xf]
    %v419 = vld [vmem:[%s406 + $0x30] sm:$0xf]
    %v420 = vld [vmem:[%s406 + $0x34] sm:$0xf]
    %v421 = vld [vmem:[%s406 + $0x38] sm:$0xf]
    %v422 = vld [vmem:[%s406 + $0x3c] sm:$0xf]
    %v439 = vunpack.c.l.b16 %v407
    %v440 = vunpack.c.l.b16 %v408
    %v441 = vunpack.c.l.b16 %v409
    %v442 = vunpack.c.l.b16 %v410
    %v443 = vunpack.c.l.b16 %v411
    %v444 = vunpack.c.l.b16 %v412
    %v445 = vunpack.c.l.b16 %v413
    %v446 = vunpack.c.l.b16 %v414
    %v447 = vunpack.c.l.b16 %v415
    %v448 = vunpack.c.l.b16 %v416
    %v449 = vunpack.c.l.b16 %v417
    %v450 = vunpack.c.l.b16 %v418
    %v451 = vunpack.c.l.b16 %v419
    %v452 = vunpack.c.l.b16 %v420
    %v453 = vunpack.c.l.b16 %v421
    %v454 = vunpack.c.l.b16 %v422
    %v455 = vpack.c.b16 %v440, %v439
    %v456 = vpack.c.b16 %v442, %v441
    %v457 = vpack.c.b16 %v444, %v443
    %v458 = vpack.c.b16 %v446, %v445
    %v459 = vpack.c.b16 %v448, %v447
    %v460 = vpack.c.b16 %v450, %v449
    %v461 = vpack.c.b16 %v452, %v451
    %v462 = vpack.c.b16 %v454, %v453
    %471 = vmatprep.subr.bf16.mxu0 0
    %472 = vmatpush1.bf16.msra.mxu0 %v455
    %473 = vmatprep.subr.bf16.mxu0 0
    %474 = vmatpush1.bf16.msra.mxu0 %v456
    %475 = vmatprep.subr.bf16.mxu0 0
    %476 = vmatpush1.bf16.msra.mxu0 %v457
    %477 = vmatprep.subr.bf16.mxu0 0
    %478 = vmatpush1.bf16.msra.mxu0 %v458
    %479 = vmatprep.subr.bf16.mxu0 0
    %480 = vmatpush1.bf16.msra.mxu0 %v459
    %481 = vmatprep.subr.bf16.mxu0 0
    %482 = vmatpush1.bf16.msra.mxu0 %v460
    %483 = vmatprep.subr.bf16.mxu0 0
    %484 = vmatpush1.bf16.msra.mxu0 %v461
    %485 = vmatprep.subr.bf16.mxu0 0
    %486 = vmatpush1.bf16.msra.mxu0 %v462
    %487 = vmatprep.subr.bf16.mxu0 0
    %488 = vmatpush1.bf16.msra.mxu0 0
    %489 = vmatprep.subr.bf16.mxu0 0
    %490 = vmatpush1.bf16.msra.mxu0 0
    %491 = vmatprep.subr.bf16.mxu0 0
    %492 = vmatpush1.bf16.msra.mxu0 0
    %493 = vmatprep.subr.bf16.mxu0 0
    %494 = vmatpush1.bf16.msra.mxu0 0
    %495 = vmatprep.subr.bf16.mxu0 0
    %496 = vmatpush1.bf16.msra.mxu0 0
    %497 = vmatprep.subr.bf16.mxu0 0
    %498 = vmatpush1.bf16.msra.mxu0 0
    %499 = vmatprep.subr.bf16.mxu0 0
    %500 = vmatpush1.bf16.msra.mxu0 0
    %501 = vmatprep.subr.bf16.mxu0 0
    %502 = vmatpush1.bf16.msra.mxu0 0
    %503 = vmatprep.mubr.bf16.mxu0 0
    %504 = vmatmul.mubr.bf16.gmra.mrb[0].mxu0 %v405
    %v505 = vpop.f32.mrb[0].mxu0
    %v506 = vadd.f32 0.0, %v505
    %v507 = vpop.f32.mrb[0].mxu0
    %v508 = vpop.f32.mrb[0].mxu0
    %v509 = vpop.f32.mrb[0].mxu0
    %510 = vdwg.mxu0
    %v511 = vadd.f32 %v400, %v506
    %v512 = vmax.f32 %v511, 0.0
    %v513 = vpack.c.bf16 %v512, %v512
    %s514 = scalar_lea.vmem [#allocation4], 320
    %v515 = vld [vmem:[%s514] sm:$0xf]
    %v516 = vld [vmem:[%s514 + $0x4] sm:$0xf]
    %v517 = vld [vmem:[%s514 + $0x8] sm:$0xf]
    %v518 = vld [vmem:[%s514 + $0xc] sm:$0xf]
    %v519 = vld [vmem:[%s514 + $0x10] sm:$0xf]
    %v520 = vld [vmem:[%s514 + $0x14] sm:$0xf]
    %v521 = vld [vmem:[%s514 + $0x18] sm:$0xf]
    %v522 = vld [vmem:[%s514 + $0x1c] sm:$0xf]
    %v523 = vld [vmem:[%s514 + $0x20] sm:$0xf]
    %v524 = vld [vmem:[%s514 + $0x24] sm:$0xf]
    %v525 = vld [vmem:[%s514 + $0x28] sm:$0xf]
    %v526 = vld [vmem:[%s514 + $0x2c] sm:$0xf]
    %v527 = vld [vmem:[%s514 + $0x30] sm:$0xf]
    %v528 = vld [vmem:[%s514 + $0x34] sm:$0xf]
    %v529 = vld [vmem:[%s514 + $0x38] sm:$0xf]
    %v530 = vld [vmem:[%s514 + $0x3c] sm:$0xf]
    %v531 = vld [vmem:[#allocation6 + $0x4] sm:$0x1]
    %v532 = vlaneseq
    %v533 = vshrl.u32 %v532, 7
    %v534 = vsub.s32 0, %v533
    %v535 = vrot.slane %v531, %v534
    %v552 = vunpack.c.l.b16 %v515
    %v553 = vunpack.c.l.b16 %v516
    %v554 = vunpack.c.l.b16 %v517
    %v555 = vunpack.c.l.b16 %v518
    %v556 = vunpack.c.l.b16 %v519
    %v557 = vunpack.c.l.b16 %v520
    %v558 = vunpack.c.l.b16 %v521
    %v559 = vunpack.c.l.b16 %v522
    %v560 = vunpack.c.l.b16 %v523
    %v561 = vunpack.c.l.b16 %v524
    %v562 = vunpack.c.l.b16 %v525
    %v563 = vunpack.c.l.b16 %v526
    %v564 = vunpack.c.l.b16 %v527
    %v565 = vunpack.c.l.b16 %v528
    %v566 = vunpack.c.l.b16 %v529
    %v567 = vunpack.c.l.b16 %v530
    %v568 = vpack.c.b16 %v553, %v552
    %v569 = vpack.c.b16 %v555, %v554
    %v570 = vpack.c.b16 %v557, %v556
    %v571 = vpack.c.b16 %v559, %v558
    %v572 = vpack.c.b16 %v561, %v560
    %v573 = vpack.c.b16 %v563, %v562
    %v574 = vpack.c.b16 %v565, %v564
    %v575 = vpack.c.b16 %v567, %v566
    %584 = vmatprep.subr.bf16.mxu0 0
    %585 = vmatpush1.bf16.msra.mxu0 %v568
    %586 = vmatprep.subr.bf16.mxu0 0
    %587 = vmatpush1.bf16.msra.mxu0 %v569
    %588 = vmatprep.subr.bf16.mxu0 0
    %589 = vmatpush1.bf16.msra.mxu0 %v570
    %590 = vmatprep.subr.bf16.mxu0 0
    %591 = vmatpush1.bf16.msra.mxu0 %v571
    %592 = vmatprep.subr.bf16.mxu0 0
    %593 = vmatpush1.bf16.msra.mxu0 %v572
    %594 = vmatprep.subr.bf16.mxu0 0
    %595 = vmatpush1.bf16.msra.mxu0 %v573
    %596 = vmatprep.subr.bf16.mxu0 0
    %597 = vmatpush1.bf16.msra.mxu0 %v574
    %598 = vmatprep.subr.bf16.mxu0 0
    %599 = vmatpush1.bf16.msra.mxu0 %v575
    %600 = vmatprep.subr.bf16.mxu0 0
    %601 = vmatpush1.bf16.msra.mxu0 0
    %602 = vmatprep.subr.bf16.mxu0 0
    %603 = vmatpush1.bf16.msra.mxu0 0
    %604 = vmatprep.subr.bf16.mxu0 0
    %605 = vmatpush1.bf16.msra.mxu0 0
    %606 = vmatprep.subr.bf16.mxu0 0
    %607 = vmatpush1.bf16.msra.mxu0 0
    %608 = vmatprep.subr.bf16.mxu0 0
    %609 = vmatpush1.bf16.msra.mxu0 0
    %610 = vmatprep.subr.bf16.mxu0 0
    %611 = vmatpush1.bf16.msra.mxu0 0
    %612 = vmatprep.subr.bf16.mxu0 0
    %613 = vmatpush1.bf16.msra.mxu0 0
    %614 = vmatprep.subr.bf16.mxu0 0
    %615 = vmatpush1.bf16.msra.mxu0 0
    %616 = vmatprep.mubr.bf16.mxu0 0
    %617 = vmatmul.mubr.bf16.gmra.mrb[0].mxu0 %v513
    %v618 = vpop.f32.mrb[0].mxu0
    %v619 = vadd.f32 %v535, %v618
    %v620 = vpop.f32.mrb[0].mxu0
    %v621 = vpop.f32.mrb[0].mxu0
    %v622 = vpop.f32.mrb[0].mxu0
    %623 = vdwg.mxu0
    %624 = vrot.lane.b32.xlu0 %v619, 16
    %v625 = vpop.permute.xlu0 %624
    %v626 = vadd.f32 %v338, %v625
    %627 = vst [vmem:[%s3] sm:$0xff] %v626
    // Predicated region
    $region26: #{forward.1} parent=1 // pred_check
      _
    $region27: #{forward.1} parent=1 // pred_check_branch
      %629 = sbr.rel (0) target = $region29
    $region28: #{forward.1} parent=1 // pred_region
      _
    $region29: #{forward.1} parent=1 // pred_fallthru
      _
    // Predicated region
    $region30: #{forward.1} parent=1 // pred_check
      _
    $region31: #{forward.1} parent=1 // pred_check_branch
      %631 = sbr.rel (0) target = $region33
    $region32: #{forward.1} parent=1 // pred_region
      _
    $region33: #{forward.1} parent=1 // pred_fallthru
      _
    %632 = vsyncpa [#allocation3], 1
    %633 = vsyncpa [#allocation5], 1

</llo_original>
